<compile_context>
chip_gen: v7x
topology: tpu7x:2x2x1
jax: 0.10.0
libtpu: 0.0.40
codegen_flags: <defaults>
</compile_context>

<pallas_src>
import functools

import jax
import jax.numpy as jnp
from jax import lax
from jax.experimental import pallas as pl
from jax.experimental.pallas import tpu as pltpu

LN_EPS = 1e-5          # torch.nn.LayerNorm default
LANE = 128
SUBLANE = 8
VMEM_BUDGET = 12 * 1024 * 1024   # fits v5e 16MiB scoped default with headroom


def _round_up(x, m):
    return (x + m - 1) // m * m


def _cdiv(a, b):
    return -(-a // b)


# --------------------------------------------------------------------------
# Pallas kernel: fused (linear backbone) + residual add + LayerNorm.
# One grid step processes one (TILE_N, Cpad) physical-row block of one rank.
# When pack > 1, each physical row holds `pack` logical rows of C channels and
# LN statistics are segmented per C-lane group via an MXU matmul with a
# constant block-diagonal segment-mean matrix.
# --------------------------------------------------------------------------
def _fused_backbone_residual_ln_kernel(c_true, pack,
                                       rank_ids_ref,   # scalar prefetch (unused in body)
                                       x_ref,          # (TILE_N, Cpad)   packed cell features
                                       w_ref,          # (Cpad, Cpad)     block-diag backbone weight (bf16)
                                       gb_ref,         # (2, Cpad)        [gamma; beta] (tiled per segment)
                                       *rest):
    del rank_ids_ref
    if pack > 1:
        m_ref, o_ref = rest                 # (Cpad, Cpad) segment-mean matrix
    else:
        (o_ref,) = rest
        m_ref = None

    x = x_ref[...].astype(jnp.float32)
    # Backbone matmul on bf16 MXU inputs, f32 accumulate; residual added in f32.
    # Padded lanes of x and padded rows/cols of W are 0, so they stay 0 in r.
    xw = jnp.dot(x.astype(jnp.bfloat16), w_ref[...],
                 preferred_element_type=jnp.float32)
    r = xw + x

    if pack > 1:
        # Segmented LN stats: M has 1/C in each (C x C) diagonal block, so
        # r @ M broadcasts each segment's mean to all of that segment's lanes.
        # MXU work; the VPU/XLU path stays free.
        mean = jnp.dot(r, m_ref[...], preferred_element_type=jnp.float32)
        msq = jnp.dot(r * r, m_ref[...], preferred_element_type=jnp.float32)
    else:
        # Padded lanes are exactly 0, so a full-lane reduction equals the
        # reduction over the true C channels.
        inv_c = jnp.float32(1.0 / c_true)
        mean = jnp.sum(r, axis=-1, keepdims=True) * inv_c
        msq = jnp.sum(r * r, axis=-1, keepdims=True) * inv_c

    # Clamp: E[r^2] - mean^2 can cancel slightly negative in f32 -> NaN in rsqrt.
    var = jnp.maximum(msq - mean * mean, 0.0)
    inv = lax.rsqrt(var + LN_EPS)

    gamma = gb_ref[0:1, :]
    beta = gb_ref[1:2, :]
    # NOTE: zero-padded rows come out as `beta` here; they are sliced off in
    # the (jitted) driver before anything downstream can observe them.
    y = (r - mean) * inv * gamma + beta
    o_ref[...] = y.astype(o_ref.dtype)


# --------------------------------------------------------------------------
# Jitted driver: one pallas_call covering every fused cell rank.
# All padding / packing / concat / un-packing happens inside the jit so it
# fuses with surrounding XLA instead of issuing eager HBM round-trips.
# --------------------------------------------------------------------------
def _fused_impl(xs, w_stack, gb_stack, m_mat, *, c_true, pack, ranks, tile_n_max):
    c_pad = w_stack.shape[-1]
    group = pack * c_true
    dtype = xs[0].dtype

    # ---- row-tile sizing with an explicit VMEM audit ----
    phys_rows = [max(1, _cdiv(x.shape[0], pack)) for x in xs]
    tile_n = min(_round_up(tile_n_max, SUBLANE),
                 _round_up(max(phys_rows), SUBLANE))

    def vmem_bytes(tn):
        b = 2 * tn * c_pad * 4                                   # x blocks (dbl-buffered, f32)
        b += 2 * tn * c_pad * 4                                  # out blocks
        b += 2 * c_pad * c_pad * jnp.dtype(w_stack.dtype).itemsize  # W (bf16)
        b += 2 * SUBLANE * c_pad * 4                             # gamma/beta block
        if pack > 1:
            b += 2 * c_pad * c_pad * 4                           # segment-mean matrix
        return b

    while tile_n > SUBLANE and vmem_bytes(tile_n) > VMEM_BUDGET:
        tile_n = max(SUBLANE, _round_up(tile_n // 2, SUBLANE))

    # v7x has 2 TensorCores: make sure the "parallel" grid has >= 2 blocks
    # whenever the data allows it (no effect on v5e/v6e, single TC).
    if sum(_cdiv(p, tile_n) for p in phys_rows) < 2 and max(phys_rows) > SUBLANE:
        tile_n = _round_up(_cdiv(max(phys_rows), 2), SUBLANE)

    # ---- pad rows, pack channels into 128 lanes, concatenate ranks ----
    x_blocks, rank_ids, spans = [], [], []
    off = 0
    for r, x in zip(ranks, xs):
        n = x.shape[0]
        n_pad = _round_up(max(n, 1), pack * tile_n)   # rank-pure blocks
        xp = jnp.zeros((n_pad, c_true), dtype).at[:n, :].set(x)
        xp = xp.reshape(n_pad // pack, group)          # free row-major pack
        if group < c_pad:
            xp = jnp.pad(xp, ((0, 0), (0, c_pad - group)))
        x_blocks.append(xp)
        n_phys = n_pad // pack
        rank_ids.extend([r] * (n_phys // tile_n))
        spans.append((off, n_phys, n))
        off += n_phys

    x_cat = jnp.concatenate(x_blocks, axis=0)          # (total_phys_rows, Cpad)
    num_blocks = len(rank_ids)
    rank_ids = jnp.asarray(rank_ids, jnp.int32)        # scalar-prefetch table

    kernel = functools.partial(_fused_backbone_residual_ln_kernel, c_true, pack)

    in_specs = [
        # streamed packed row blocks of the concatenated cell features
        pl.BlockSpec((tile_n, c_pad), lambda i, rids: (i, 0)),
        # per-rank params selected by the prefetched rank id of block i
        pl.BlockSpec((None, c_pad, c_pad), lambda i, rids: (rids[i], 0, 0)),
        pl.BlockSpec((None, 2, c_pad), lambda i, rids: (rids[i], 0, 0)),
    ]
    operands = [rank_ids, x_cat, w_stack, gb_stack]
    if pack > 1:
        # constant segment-mean matrix: block index never changes -> resident
        in_specs.append(pl.BlockSpec((c_pad, c_pad), lambda i, rids: (0, 0)))
        operands.append(m_mat)

    grid_spec = pltpu.PrefetchScalarGridSpec(
        num_scalar_prefetch=1,
        grid=(num_blocks,),
        in_specs=in_specs,
        out_specs=pl.BlockSpec((tile_n, c_pad), lambda i, rids: (i, 0)),
    )

    y_cat = pl.pallas_call(
        kernel,
        out_shape=jax.ShapeDtypeStruct((x_cat.shape[0], c_pad), dtype),
        grid_spec=grid_spec,
        compiler_params=pltpu.CompilerParams(
            # row blocks are independent -> shard across TCs on v7x megacore
            dimension_semantics=("parallel",),
        ),
    )(*operands)

    # Un-pack lanes back to logical rows and strip row padding (fused under jit).
    outs = []
    for (o, n_phys, n) in spans:
        yp = y_cat[o:o + n_phys, :group].reshape(n_phys * pack, c_true)
        outs.append(yp[:n])
    return tuple(outs)


_fused_jit = jax.jit(
    _fused_impl, static_argnames=("c_true", "pack", "ranks", "tile_n_max"))


# --------------------------------------------------------------------------
# Wrapper (mirrors AbstractWrapper.__call__ / residual_connection semantics)
# --------------------------------------------------------------------------
class PallasWrapper:
    """JAX/Pallas analogue of topobench AbstractWrapper with a linear backbone.

    The per-rank linear backbone and the wrapper's residual + LayerNorm are
    fused into one Pallas call covering all cell ranks.  Per-rank weight /
    LayerNorm stacks (block-diagonal, lane-packed, bf16 weights) are built once
    at construction time.
    """

    def __init__(self, backbone_weights, features_to_keep=None, *,
                 out_channels, num_cell_dimensions=1, residual_connections=True,
                 tile_n_max=1024):
        self.backbone_weights = backbone_weights          # dict: rank -> (C, C)
        self.out_channels = out_channels
        self.dimensions = range(num_cell_dimensions)
        self.residual_connections = residual_connections
        self.features_to_keep = features_to_keep if features_to_keep else []
        self.tile_n_max = tile_n_max

        # nn.LayerNorm(out_channels) default init: weight=1, bias=0
        self.ln_params = {
            i: (jnp.ones((out_channels,), jnp.float32),
                jnp.zeros((out_channels,), jnp.float32))
            for i in self.dimensions
        }

        # ---- one-time packed parameter stacks ----
        c = out_channels
        self.pack = max(1, LANE // c)                      # rows packed per 128 lanes
        group = self.pack * c
        self.c_pad = _round_up(group, LANE)
        num_ranks = num_cell_dimensions

        w_stack = jnp.zeros((num_ranks, self.c_pad, self.c_pad), jnp.bfloat16)
        gb_stack = jnp.zeros((num_ranks, 2, self.c_pad), jnp.float32)
        eye_p = jnp.eye(self.pack, dtype=jnp.float32)
        for i in self.dimensions:
            if i in backbone_weights:
                wb = jnp.kron(eye_p, backbone_weights[i].astype(jnp.float32))
                w_stack = w_stack.at[i, :group, :group].set(wb.astype(jnp.bfloat16))
            gamma, beta = self.ln_params[i]
            gb_stack = gb_stack.at[i, 0, :group].set(jnp.tile(gamma, self.pack))
            gb_stack = gb_stack.at[i, 1, :group].set(jnp.tile(beta, self.pack))
        self._w_stack = w_stack
        self._gb_stack = gb_stack

        if self.pack > 1:
            m = jnp.kron(eye_p, jnp.ones((c, c), jnp.float32)) / float(c)
            m_mat = jnp.zeros((self.c_pad, self.c_pad), jnp.float32)
            self._m_mat = m_mat.at[:group, :group].set(m)
        else:
            self._m_mat = None

    def forward(self, batch):
        """Plain-JAX linear backbone (used only where fusion doesn't apply)."""
        out = {}
        for i in self.dimensions:
            key = f"x_{i}"
            if key in batch and i in self.backbone_weights:
                out[key] = batch[key] @ self.backbone_weights[i]
        return out

    def __call__(self, batch):
        if self.residual_connections:
            fused_ranks = tuple(i for i in self.dimensions
                                if f"x_{i}" in batch
                                and i in self.ln_params
                                and i in self.backbone_weights)
        else:
            fused_ranks = ()

        # Backbone only for ranks NOT handled by the fused kernel
        # (fused ranks get backbone + residual + LN inside one Pallas call).
        model_out = {}
        for i in self.dimensions:
            key = f"x_{i}"
            if key in batch and i in self.backbone_weights and i not in fused_ranks:
                model_out[key] = batch[key] @ self.backbone_weights[i]

        if fused_ranks:
            outs = _fused_jit(
                tuple(batch[f"x_{i}"] for i in fused_ranks),
                self._w_stack, self._gb_stack, self._m_mat,
                c_true=self.out_channels, pack=self.pack,
                ranks=fused_ranks, tile_n_max=self.tile_n_max)
            for i, y in zip(fused_ranks, outs):
                model_out[f"x_{i}"] = y

        for feature in self.features_to_keep:
            model_out[feature] = batch[feature]
        return model_out


# --------------------------------------------------------------------------
# Reference (pure jnp) for sanity check.
# --------------------------------------------------------------------------
def _ref_residual_ln(xm, xb, gamma, beta):
    r = xm + xb
    mean = jnp.mean(r, axis=-1, keepdims=True)
    var = jnp.mean((r - mean) ** 2, axis=-1, keepdims=True)
    return (r - mean) * lax.rsqrt(var + LN_EPS) * gamma + beta


if __name__ == "__main__":
    key = jax.random.PRNGKey(0)
    out_channels = 32
    num_cell_dimensions = 2
    n_cells = {0: 16, 1: 24}          # e.g. 16 nodes, 24 edges

    k0, k1, kw0, kw1 = jax.random.split(key, 4)
    batch = {
        "x_0": jax.random.normal(k0, (n_cells[0], out_channels), jnp.float32),
        "x_1": jax.random.normal(k1, (n_cells[1], out_channels), jnp.float32),
    }
    weights = {
        0: jax.random.normal(kw0, (out_channels, out_channels), jnp.float32) * 0.1,
        1: jax.random.normal(kw1, (out_channels, out_channels), jnp.float32) * 0.1,
    }

    wrapper = PallasWrapper(
        weights,
        features_to_keep=None,
        out_channels=out_channels,
        num_cell_dimensions=num_cell_dimensions,
        residual_connections=True,
    )

    model_out = wrapper(batch)
    for v in model_out.values():
        jax.block_until_ready(v)

    # Correctness check vs pure-JAX reference (HIGHEST-precision matmul gold).
    # Tolerance is derived from the bf16-input matmul bound instead of a fixed
    # constant: rounding x and W to bf16 perturbs x@W by <= ~2^-8 * (|x|@|W|);
    # LayerNorm then divides by std(r) ~ O(1).
    ok = True
    for i in range(num_cell_dimensions):
        key_i = f"x_{i}"
        gamma, beta = wrapper.ln_params[i]
        xm_ref = jnp.dot(batch[key_i], weights[i], precision=lax.Precision.HIGHEST)
        ref = _ref_residual_ln(xm_ref, batch[key_i], gamma, beta)
        got = model_out[key_i]
        err_bound = float((2.0 ** -8)
                          * jnp.max(jnp.abs(batch[key_i]) @ jnp.abs(weights[i])))
        atol = 1.5 * err_bound + 1e-3
        ok &= got.shape == ref.shape
        ok &= bool(jnp.all(jnp.isfinite(got)))
        ok &= bool(jnp.allclose(got, ref, atol=atol, rtol=0.0))

    print("KERNEL_OK" if ok else "MISMATCH")
</pallas_src>

<mosaic_0001>
module attributes {stable_mosaic.version = 11 : i64} {
  func.func @_fused_backbone_residual_ln_kernel(%arg0: i32, %arg1: memref<2xi32, #tpu.memory_space<smem>>, %arg2: memref<8x128xf32, #tpu.memory_space<vmem>>, %arg3: memref<1x128x128xbf16, #tpu.memory_space<vmem>>, %arg4: memref<1x2x128xf32, #tpu.memory_space<vmem>>, %arg5: memref<128x128xf32, #tpu.memory_space<vmem>>, %arg6: memref<8x128xf32, #tpu.memory_space<vmem>>) attributes {dimension_semantics = [#tpu.dimension_semantics<parallel>], iteration_bounds = array<i64: 2>, scalar_prefetch = 1 : i64, scratch_operands = 0 : i64, tpu.core_type = #tpu.core_type<tc>, window_params = [{transform_indices = @transform_0, window_bounds = array<i64: 8, 128>}, {transform_indices = @transform_1, window_bounds = array<i64: 1, 128, 128>}, {transform_indices = @transform_2, window_bounds = array<i64: 1, 2, 128>}, {pipeline_mode = #tpu.pipeline_mode<synchronous>, transform_indices = @transform_3, window_bounds = array<i64: 128, 128>}, {transform_indices = @transform_4, window_bounds = array<i64: 8, 128>}]} {
    %c0 = arith.constant 0 : index
    %c0_0 = arith.constant 0 : index
    %0 = vector.load %arg2[%c0, %c0_0] : memref<8x128xf32, #tpu.memory_space<vmem>>, vector<8x128xf32>
    %1 = arith.truncf %0 : vector<8x128xf32> to vector<8x128xbf16>
    %c0_1 = arith.constant 0 : index
    %c0_2 = arith.constant 0 : index
    %c0_3 = arith.constant 0 : index
    %2 = vector.load %arg3[%c0_1, %c0_2, %c0_3] : memref<1x128x128xbf16, #tpu.memory_space<vmem>>, vector<1x128x128xbf16>
    %3 = vector.shape_cast %2 : vector<1x128x128xbf16> to vector<128x128xbf16>
    %cst = arith.constant dense<0.000000e+00> : vector<8x128xf32>
    %4 = tpu.matmul %1, %3, %cst {dimension_numbers = #tpu.dot_dimension_numbers<[1], [0], [0], [1], [0, 0, 1, 1], [], []>} : vector<8x128xbf16>, vector<128x128xbf16>, vector<8x128xf32> -> vector<8x128xf32>
    %5 = arith.addf %4, %0 : vector<8x128xf32>
    %c0_4 = arith.constant 0 : index
    %c0_5 = arith.constant 0 : index
    %6 = vector.load %arg5[%c0_4, %c0_5] : memref<128x128xf32, #tpu.memory_space<vmem>>, vector<128x128xf32>
    %cst_6 = arith.constant dense<0.000000e+00> : vector<8x128xf32>
    %7 = tpu.matmul %5, %6, %cst_6 {dimension_numbers = #tpu.dot_dimension_numbers<[1], [0], [0], [1], [0, 0, 1, 1], [], []>} : vector<8x128xf32>, vector<128x128xf32>, vector<8x128xf32> -> vector<8x128xf32>
    %8 = arith.mulf %5, %5 : vector<8x128xf32>
    %c0_7 = arith.constant 0 : index
    %c0_8 = arith.constant 0 : index
    %9 = vector.load %arg5[%c0_7, %c0_8] : memref<128x128xf32, #tpu.memory_space<vmem>>, vector<128x128xf32>
    %cst_9 = arith.constant dense<0.000000e+00> : vector<8x128xf32>
    %10 = tpu.matmul %8, %9, %cst_9 {dimension_numbers = #tpu.dot_dimension_numbers<[1], [0], [0], [1], [0, 0, 1, 1], [], []>} : vector<8x128xf32>, vector<128x128xf32>, vector<8x128xf32> -> vector<8x128xf32>
    %11 = arith.mulf %7, %7 : vector<8x128xf32>
    %12 = arith.subf %10, %11 : vector<8x128xf32>
    %cst_10 = arith.constant 0.000000e+00 : f32
    %13 = vector.broadcast %cst_10 : f32 to vector<8x128xf32>
    %14 = arith.maximumf %12, %13 : vector<8x128xf32>
    %cst_11 = arith.constant 9.99999974E-6 : f32
    %15 = vector.broadcast %cst_11 : f32 to vector<8x128xf32>
    %16 = arith.addf %14, %15 : vector<8x128xf32>
    %17 = math.rsqrt %16 : vector<8x128xf32>
    %c0_12 = arith.constant 0 : index
    %c0_13 = arith.constant 0 : index
    %c0_14 = arith.constant 0 : index
    %18 = vector.load %arg4[%c0_12, %c0_13, %c0_14] : memref<1x2x128xf32, #tpu.memory_space<vmem>>, vector<1x1x128xf32>
    %19 = vector.shape_cast %18 : vector<1x1x128xf32> to vector<1x128xf32>
    %c0_15 = arith.constant 0 : index
    %c1 = arith.constant 1 : index
    %c0_16 = arith.constant 0 : index
    %20 = vector.load %arg4[%c0_15, %c1, %c0_16] : memref<1x2x128xf32, #tpu.memory_space<vmem>>, vector<1x1x128xf32>
    %21 = vector.shape_cast %20 : vector<1x1x128xf32> to vector<1x128xf32>
    %22 = arith.subf %5, %7 : vector<8x128xf32>
    %23 = arith.mulf %22, %17 : vector<8x128xf32>
    %24 = vector.broadcast %19 : vector<1x128xf32> to vector<8x128xf32>
    %25 = arith.mulf %23, %24 : vector<8x128xf32>
    %26 = vector.broadcast %21 : vector<1x128xf32> to vector<8x128xf32>
    %27 = arith.addf %25, %26 : vector<8x128xf32>
    %c0_17 = arith.constant 0 : index
    %c0_18 = arith.constant 0 : index
    %28 = vector.load %arg6[%c0_17, %c0_18] : memref<8x128xf32, #tpu.memory_space<vmem>>, vector<8x128xf32>
    tpu.vector_store %arg6[%c0_17, %c0_18], %27 {strides = array<i32>} : memref<8x128xf32, #tpu.memory_space<vmem>>, vector<8x128xf32>,
    return
  }
  func.func @transform_0(%arg0: i32, %arg1: memref<2xi32, #tpu.memory_space<smem>>) -> (i32, i32) {
    %c0_i32 = arith.constant 0 : i32
    %c0_i32_0 = arith.constant 0 : i32
    return %arg0, %c0_i32 : i32, i32
  }
  func.func @transform_1(%arg0: i32, %arg1: memref<2xi32, #tpu.memory_space<smem>>) -> (i32, i32, i32) {
    %0 = arith.index_cast %arg0 : i32 to index
    %1 = memref.load %arg1[%0] : memref<2xi32, #tpu.memory_space<smem>>
    %c0_i32 = arith.constant 0 : i32
    %c0_i32_0 = arith.constant 0 : i32
    %c0_i32_1 = arith.constant 0 : i32
    return %1, %c0_i32, %c0_i32_0 : i32, i32, i32
  }
  func.func @transform_2(%arg0: i32, %arg1: memref<2xi32, #tpu.memory_space<smem>>) -> (i32, i32, i32) {
    %0 = arith.index_cast %arg0 : i32 to index
    %1 = memref.load %arg1[%0] : memref<2xi32, #tpu.memory_space<smem>>
    %c0_i32 = arith.constant 0 : i32
    %c0_i32_0 = arith.constant 0 : i32
    %c0_i32_1 = arith.constant 0 : i32
    return %1, %c0_i32, %c0_i32_0 : i32, i32, i32
  }
  func.func @transform_3(%arg0: i32, %arg1: memref<2xi32, #tpu.memory_space<smem>>) -> (i32, i32) {
    %c0_i32 = arith.constant 0 : i32
    %c0_i32_0 = arith.constant 0 : i32
    %c0_i32_1 = arith.constant 0 : i32
    return %c0_i32, %c0_i32_0 : i32, i32
  }
  func.func @transform_4(%arg0: i32, %arg1: memref<2xi32, #tpu.memory_space<smem>>) -> (i32, i32) {
    %c0_i32 = arith.constant 0 : i32
    %c0_i32_0 = arith.constant 0 : i32
    return %arg0, %c0_i32 : i32, i32
  }
}

</mosaic_0001>

<llo_original>
// kernel: _fused_impl.1
$region0: #{_fused_impl.1}
  #allocation0 [shape = 'u32[]', space=smem, size = 0x4, offset = 0x4, fixed_abs, tag = 'smem constant byte address 0x4 - core index']
  #allocation1 [shape = 'u32[144,128]{1,0:T(1,128)}', space=vmem, size = 0x12000, scoped, tag = 'internal scratch']
  #allocation2 [shape = 's32[1]{0}', space=sflag, size = 0x4, scoped, tag = 'scoped memory for _fused_impl.1']
  #allocation3 [shape = 'u8[512]{0}', space=smem, size = 0x200, scoped, tag = 'prefetched SMEM operand 0']
  %s0 = inlined_call_operand.vmem [shape: s32[2], index: 0, kind: input, shape index: {}]
  %s1 = inlined_call_operand.vmem [shape: f32[16,128], index: 1, kind: input, shape index: {}]
  %s2 = inlined_call_operand.vmem [shape: bf16[2,128,128], index: 2, kind: input, shape index: {}]
  %s3 = inlined_call_operand.vmem [shape: f32[2,2,128], index: 3, kind: input, shape index: {}]
  %s4 = inlined_call_operand.hbm [shape: f32[128,128], index: 4, kind: input, shape index: {}]
  %s5 = inlined_call_operand.vmem [shape: f32[16,128], index: 5, kind: output, shape index: {}]
  %s6 = sld [smem:[#allocation0]]
  $region53: #{_fused_impl.1} parent=0
    _
  %s8 = ssub.s32 1, %s6
  %s9 = scalar_select 0, %s8, %s6
  %s10 = sshll.u32 %s0, 4
  %s11 = int_to_ptr.vmem [resolvable:$true] %s10
  %13 = dma.vmem_to_smem %s11, 16, [#allocation3], [#allocation2]
  %14 = dma.done [#allocation2], 16
  %15 = sfence
  $region1: #{_fused_impl.1} parent=0
    #allocation4 [shape = 'u8[65536]{0}', space=vmem, size = 0x10000, scoped, tag = 'input window, operand 4, single buffered']
    #allocation5 [shape = 's32[2]{0}', space=sflag, size = 0x8, scoped, tag = 'scoped memory for _fused_impl.1']
    %16 = vsyncpa [#allocation5], 0
    loop: start=0, step=1, limit=4
    $region2: #{_fused_impl.1} parent=1 // loop_pre_header
      _
    $region3: #{_fused_impl.1} parent=1 // loop_header
      %s18 = sphi 0, %s22
      %p19 = scmp.ge.s32.totalorder %s18, 4
      %s28 = sphi 0, %s30
      %s31 = sphi 0, %s28
      %s32 = sphi 0, %s31
      %s48 = sphi 0, %s32
      %s56 = sphi 0, %s58
      %s59 = sphi 0, %s56
      %s60 = sphi 0, %s59
      %s76 = sphi 0, %s60
      %s84 = sphi 0, %s86
      %s87 = sphi 0, %s84
      %s88 = sphi 0, %s87
      %s104 = sphi 0, %s88
      %s108 = sphi 0, %s108
      %s110 = sphi 0, %s108
      %s111 = sphi 0, %s110
      %s125 = sphi 0, %s111
      %s131 = sphi 0, %s133
      %s134 = sphi 0, %s131
      %s135 = sphi 0, %s134
      %s151 = sphi 0, %s135
    $region4: #{_fused_impl.1} parent=1 // loop_header_branch
      %21 = sbr.rel (%p19) target = $region8
    $region5: #{_fused_impl.1} parent=1 // loop_body
      %s23 = ssub.s32 %s18, 1
      %s24 = ssub.s32 %s18, 2
      %s25 = sadd.s32 %s18, 1
      %s26 = ssub.s32 %s18, %s25
      %p27 = scmp.eq.s32.totalorder %s26, 0
      %s29 = sadd.s32 %s28, 1
      %s30 = scalar_select %p27, %s28, %s29
      %p33 = pneg %p27
      %p34 = scmp.eq.s32.totalorder %s18, 1
      %p35 = por %p33, %p34
      %p36 = scmp.ne.s32.totalorder %s28, %s31
      %p37 = scmp.eq.s32.totalorder %s18, 0
      %p38 = por %p36, %p37
      %p39 = scmp.ne.s32.totalorder %s28, %s31
      %p40 = scmp.eq.s32.totalorder %s23, 1
      %p41 = por %p39, %p40
      %p42 = scmp.ne.s32.totalorder %s31, %s32
      %p43 = scmp.eq.s32.totalorder %s23, 0
      %p44 = por %p42, %p43
      %p45 = scmp.ne.s32.totalorder %s31, %s32
      %p46 = scmp.eq.s32.totalorder %s24, 1
      %p47 = por %p45, %p46
      %p49 = scmp.ne.s32.totalorder %s32, %s48
      %p50 = scmp.eq.s32.totalorder %s24, 0
      %p51 = por %p49, %p50
      %s52 = sld [smem:[#allocation3 + %s18]]
      %s53 = sld [smem:[#allocation3 + %s25]]
      %s54 = ssub.s32 %s52, %s53
      %p55 = scmp.eq.s32.totalorder %s54, 0
      %s57 = sadd.s32 %s56, 1
      %s58 = scalar_select %p55, %s56, %s57
      %p61 = pneg %p55
      %p62 = scmp.eq.s32.totalorder %s18, 1
      %p63 = por %p61, %p62
      %p64 = scmp.ne.s32.totalorder %s56, %s59
      %p65 = scmp.eq.s32.totalorder %s18, 0
      %p66 = por %p64, %p65
      %p67 = scmp.ne.s32.totalorder %s56, %s59
      %p68 = scmp.eq.s32.totalorder %s23, 1
      %p69 = por %p67, %p68
      %p70 = scmp.ne.s32.totalorder %s59, %s60
      %p71 = scmp.eq.s32.totalorder %s23, 0
      %p72 = por %p70, %p71
      %p73 = scmp.ne.s32.totalorder %s59, %s60
      %p74 = scmp.eq.s32.totalorder %s24, 1
      %p75 = por %p73, %p74
      %p77 = scmp.ne.s32.totalorder %s60, %s76
      %p78 = scmp.eq.s32.totalorder %s24, 0
      %p79 = por %p77, %p78
      %s80 = sld [smem:[#allocation3 + %s18]]
      %s81 = sld [smem:[#allocation3 + %s25]]
      %s82 = ssub.s32 %s80, %s81
      %p83 = scmp.eq.s32.totalorder %s82, 0
      %s85 = sadd.s32 %s84, 1
      %s86 = scalar_select %p83, %s84, %s85
      %p89 = pneg %p83
      %p90 = scmp.eq.s32.totalorder %s18, 1
      %p91 = por %p89, %p90
      %p92 = scmp.ne.s32.totalorder %s84, %s87
      %p93 = scmp.eq.s32.totalorder %s18, 0
      %p94 = por %p92, %p93
      %p95 = scmp.ne.s32.totalorder %s84, %s87
      %p96 = scmp.eq.s32.totalorder %s23, 1
      %p97 = por %p95, %p96
      %p98 = scmp.ne.s32.totalorder %s87, %s88
      %p99 = scmp.eq.s32.totalorder %s23, 0
      %p100 = por %p98, %p99
      %p101 = scmp.ne.s32.totalorder %s87, %s88
      %p102 = scmp.eq.s32.totalorder %s24, 1
      %p103 = por %p101, %p102
      %p105 = scmp.ne.s32.totalorder %s88, %s104
      %p106 = scmp.eq.s32.totalorder %s24, 0
      %p107 = por %p105, %p106
      %s109 = sadd.s32 %s108, 1
      %p112 = scmp.eq.s32.totalorder %s18, 1
      %p113 = scmp.ne.s32.totalorder %s108, %s110
      %p114 = scmp.eq.s32.totalorder %s18, 0
      %p115 = por %p113, %p114
      %p116 = scmp.ne.s32.totalorder %s108, %s110
      %p117 = scmp.eq.s32.totalorder %s23, 1
      %p118 = por %p116, %p117
      %p119 = scmp.ne.s32.totalorder %s110, %s111
      %p120 = scmp.eq.s32.totalorder %s23, 0
      %p121 = por %p119, %p120
      %p122 = scmp.ne.s32.totalorder %s110, %s111
      %p123 = scmp.eq.s32.totalorder %s24, 1
      %p124 = por %p122, %p123
      %p126 = scmp.ne.s32.totalorder %s111, %s125
      %p127 = scmp.eq.s32.totalorder %s24, 0
      %p128 = por %p126, %p127
      %s129 = ssub.s32 %s18, %s25
      %p130 = scmp.eq.s32.totalorder %s129, 0
      %s132 = sadd.s32 %s131, 1
      %s133 = scalar_select %p130, %s131, %s132
      %p136 = pneg %p130
      %p137 = scmp.eq.s32.totalorder %s18, 1
      %p138 = por %p136, %p137
      %p139 = scmp.ne.s32.totalorder %s131, %s134
      %p140 = scmp.eq.s32.totalorder %s18, 0
      %p141 = por %p139, %p140
      %p142 = scmp.ne.s32.totalorder %s131, %s134
      %p143 = scmp.eq.s32.totalorder %s23, 1
      %p144 = por %p142, %p143
      %p145 = scmp.ne.s32.totalorder %s134, %s135
      %p146 = scmp.eq.s32.totalorder %s23, 0
      %p147 = por %p145, %p146
      %p148 = scmp.ne.s32.totalorder %s134, %s135
      %p149 = scmp.eq.s32.totalorder %s24, 1
      %p150 = por %p148, %p149
      %p152 = scmp.ne.s32.totalorder %s135, %s151
      %p153 = scmp.eq.s32.totalorder %s24, 0
      %p154 = por %p152, %p153
      %p155 = scmp.le.s32.totalorder 1, %s18
      %p156 = scmp.lt.s32.totalorder %s18, 3
      %p157 = pnand %p155, %p156
      %p158 = pneg %p157
      // Predicated region
      $region9: #{_fused_impl.1} parent=5 // pred_check
        _
      $region10: #{_fused_impl.1} parent=5 // pred_check_branch
        %160 = sbr.rel (%p157) target = $region12
      $region11: #{_fused_impl.1} parent=5 // pred_region
        %s161 = ssub.s32 %s18, 1
        // Predicated region
        $region13: #{_fused_impl.1} parent=11 // pred_check
          %p162 = pneg %p121
        $region14: #{_fused_impl.1} parent=11 // pred_check_branch
          %164 = sbr.rel (%p162) target = $region16
        $region15: #{_fused_impl.1} parent=11 // pred_region
          %s166 = ssub.s32 2048, 2048
          %167 = vsyncadd [#allocation5], %s166
          %s168 = sshll.u32 [#allocation4], 4
          %s169 = int_to_ptr.vmem [resolvable:$true] %s168
          %174 = dma.hbm_to_vmem [thread:$0]  %s4, 2048, %s169, [#allocation5], 128, 128, 8
        $region16: #{_fused_impl.1} parent=11 // pred_fallthru
          _
      $region12: #{_fused_impl.1} parent=5 // pred_fallthru
        _
      %p175 = scmp.lt.s32.totalorder %s18, 2
      // Predicated region
      $region17: #{_fused_impl.1} parent=5 // pred_check
        %p176 = pneg %p175
      $region18: #{_fused_impl.1} parent=5 // pred_check_branch
        %178 = sbr.rel (%p176) target = $region20
      $region19: #{_fused_impl.1} parent=5 // pred_region
        // Predicated region
        $region21: #{_fused_impl.1} parent=19 // pred_check
          %p179 = pneg %p38
        $region22: #{_fused_impl.1} parent=19 // pred_check_branch
          %181 = sbr.rel (%p179) target = $region24
        $region23: #{_fused_impl.1} parent=19 // pred_region
          %p182 = scmp.lt.s32.totalorder %s18, 1
          %s183 = scalar_select %p182, %s18, 1
          %s184 = smul.addr %s183, 8
          %s185 = scalar_lea.vmem %s1, %s184
        $region24: #{_fused_impl.1} parent=19 // pred_fallthru
          _
        // Predicated region
        $region25: #{_fused_impl.1} parent=19 // pred_check
          %p186 = pneg %p66
        $region26: #{_fused_impl.1} parent=19 // pred_check_branch
          %188 = sbr.rel (%p186) target = $region28
        $region27: #{_fused_impl.1} parent=19 // pred_region
          %s189 = sld [smem:[#allocation3 + %s18]]
          %p190 = scmp.lt.s32.totalorder %s189, 1
          %s191 = scalar_select %p190, %s189, 1
          %s192 = smul.addr %s191, 16
          %s193 = smul.addr %s192, 4
          %s194 = scalar_lea.vmem %s2, %s193
          %s195 = sld [smem:[#allocation3 + %s18]]
        $region28: #{_fused_impl.1} parent=19 // pred_fallthru
          _
        // Predicated region
        $region29: #{_fused_impl.1} parent=19 // pred_check
          %p196 = pneg %p94
        $region30: #{_fused_impl.1} parent=19 // pred_check_branch
          %198 = sbr.rel (%p196) target = $region32
        $region31: #{_fused_impl.1} parent=19 // pred_region
          %s199 = sld [smem:[#allocation3 + %s18]]
          %p200 = scmp.lt.s32.totalorder %s199, 1
          %s201 = scalar_select %p200, %s199, 1
          %s202 = smul.addr %s201, 2
          %s203 = scalar_lea.vmem %s3, %s202
          %s204 = sld [smem:[#allocation3 + %s18]]
        $region32: #{_fused_impl.1} parent=19 // pred_fallthru
          _
      $region20: #{_fused_impl.1} parent=5 // pred_fallthru
        _
      %p205 = scmp.le.s32.totalorder 1, %s18
      %p206 = scmp.lt.s32.totalorder %s18, 3
      %p207 = pnand %p205, %p206
      %p208 = pneg %p207
      // Predicated region
      $region33: #{_fused_impl.1} parent=5 // pred_check
        _
      $region34: #{_fused_impl.1} parent=5 // pred_check_branch
        %210 = sbr.rel (%p207) target = $region36
      $region35: #{_fused_impl.1} parent=5 // pred_region
        %s211 = ssub.s32 %s18, 1
        // Predicated region
        $region37: #{_fused_impl.1} parent=35 // pred_check
          %p212 = pneg %p121
        $region38: #{_fused_impl.1} parent=35 // pred_check_branch
          %214 = sbr.rel (%p212) target = $region40
        $region39: #{_fused_impl.1} parent=35 // pred_region
          %215 = dma.done [#allocation5], 2048
        $region40: #{_fused_impl.1} parent=35 // pred_fallthru
          _
        %p216 = scmp.lt.s32.totalorder %s23, 1
        %s217 = scalar_select %p216, %s23, 1
        %s218 = smul.addr %s217, 8
        %s219 = scalar_lea.vmem %s1, %s218
        %p220 = pneg %p44
        %p221 = pneg %p41
        %s222 = sld [smem:[#allocation3 + %s23]]
        %p223 = scmp.lt.s32.totalorder %s222, 1
        %s224 = scalar_select %p223, %s222, 1
        %s225 = smul.addr %s224, 16
        %s226 = smul.addr %s225, 4
        %s227 = scalar_lea.vmem %s2, %s226
        %p228 = pneg %p72
        %p229 = pneg %p69
        %s230 = sld [smem:[#allocation3 + %s23]]
        %p231 = scmp.lt.s32.totalorder %s230, 1
        %s232 = scalar_select %p231, %s230, 1
        %s233 = smul.addr %s232, 2
        %s234 = scalar_lea.vmem %s3, %s233
        %p235 = pneg %p100
        %p236 = pneg %p97
        %p237 = pneg %p121
        %p238 = pneg %p118
        %p239 = pneg %p147
        %p240 = pneg %p144
        %p241 = scmp.lt.s32.totalorder %s23, 1
        %s242 = scalar_select %p241, %s23, 1
        %s243 = smul.addr %s242, 8
        %s244 = scalar_lea.vmem %s5, %s243
        %p245 = scmp.lt.s32.totalorder %s23, 1
        %s246 = scalar_select %p245, %s23, 1
        %s247 = smul.addr %s246, 8
        %s248 = scalar_lea.vmem %s1, %s247
        %s249 = sld [smem:[#allocation3 + %s23]]
        %p250 = scmp.lt.s32.totalorder %s249, 1
        %s251 = scalar_select %p250, %s249, 1
        %s252 = smul.addr %s251, 16
        %s253 = smul.addr %s252, 4
        %s254 = scalar_lea.vmem %s2, %s253
        %s255 = sld [smem:[#allocation3 + %s23]]
        %s256 = sld [smem:[#allocation3 + %s23]]
        %p257 = scmp.lt.s32.totalorder %s256, 1
        %s258 = scalar_select %p257, %s256, 1
        %s259 = smul.addr %s258, 2
        %s260 = scalar_lea.vmem %s3, %s259
        %s261 = sld [smem:[#allocation3 + %s23]]
        %p262 = scmp.lt.s32.totalorder %s23, 1
        %s263 = scalar_select %p262, %s23, 1
        %s264 = smul.addr %s263, 8
        %s265 = scalar_lea.vmem %s5, %s264
        %v267 = vld [vmem:[%s248] sm:$0xff]
        %v268 = vpack.c.bf16 %v267, %v267
        %v269 = vld [vmem:[%s254] sm:$0xf]
        %v270 = vld [vmem:[%s254 + $0x4] sm:$0xf]
        %v271 = vld [vmem:[%s254 + $0x8] sm:$0xf]
        %v272 = vld [vmem:[%s254 + $0xc] sm:$0xf]
        %v273 = vld [vmem:[%s254 + $0x10] sm:$0xf]
        %v274 = vld [vmem:[%s254 + $0x14] sm:$0xf]
        %v275 = vld [vmem:[%s254 + $0x18] sm:$0xf]
        %v276 = vld [vmem:[%s254 + $0x1c] sm:$0xf]
        %v277 = vld [vmem:[%s254 + $0x20] sm:$0xf]
        %v278 = vld [vmem:[%s254 + $0x24] sm:$0xf]
        %v279 = vld [vmem:[%s254 + $0x28] sm:$0xf]
        %v280 = vld [vmem:[%s254 + $0x2c] sm:$0xf]
        %v281 = vld [vmem:[%s254 + $0x30] sm:$0xf]
        %v282 = vld [vmem:[%s254 + $0x34] sm:$0xf]
        %v283 = vld [vmem:[%s254 + $0x38] sm:$0xf]
        %v284 = vld [vmem:[%s254 + $0x3c] sm:$0xf]
        %v301 = vunpack.c.l.b16 %v269
        %v302 = vunpack.c.l.b16 %v270
        %v303 = vunpack.c.l.b16 %v271
        %v304 = vunpack.c.l.b16 %v272
        %v305 = vunpack.c.l.b16 %v273
        %v306 = vunpack.c.l.b16 %v274
        %v307 = vunpack.c.l.b16 %v275
        %v308 = vunpack.c.l.b16 %v276
        %v309 = vunpack.c.l.b16 %v277
        %v310 = vunpack.c.l.b16 %v278
        %v311 = vunpack.c.l.b16 %v279
        %v312 = vunpack.c.l.b16 %v280
        %v313 = vunpack.c.l.b16 %v281
        %v314 = vunpack.c.l.b16 %v282
        %v315 = vunpack.c.l.b16 %v283
        %v316 = vunpack.c.l.b16 %v284
        %v317 = vpack.c.b16 %v302, %v301
        %v318 = vpack.c.b16 %v304, %v303
        %v319 = vpack.c.b16 %v306, %v305
        %v320 = vpack.c.b16 %v308, %v307
        %v321 = vpack.c.b16 %v310, %v309
        %v322 = vpack.c.b16 %v312, %v311
        %v323 = vpack.c.b16 %v314, %v313
        %v324 = vpack.c.b16 %v316, %v315
        %333 = vmatprep.subr.bf16.mxu0 0
        %334 = vmatpush1.bf16.msra.mxu0 %v317
        %335 = vmatprep.subr.bf16.mxu0 0
        %336 = vmatpush1.bf16.msra.mxu0 %v318
        %337 = vmatprep.subr.bf16.mxu0 0
        %338 = vmatpush1.bf16.msra.mxu0 %v319
        %339 = vmatprep.subr.bf16.mxu0 0
        %340 = vmatpush1.bf16.msra.mxu0 %v320
        %341 = vmatprep.subr.bf16.mxu0 0
        %342 = vmatpush1.bf16.msra.mxu0 %v321
        %343 = vmatprep.subr.bf16.mxu0 0
        %344 = vmatpush1.bf16.msra.mxu0 %v322
        %345 = vmatprep.subr.bf16.mxu0 0
        %346 = vmatpush1.bf16.msra.mxu0 %v323
        %347 = vmatprep.subr.bf16.mxu0 0
        %348 = vmatpush1.bf16.msra.mxu0 %v324
        %349 = vmatprep.subr.bf16.mxu0 0
        %350 = vmatpush1.bf16.msra.mxu0 0
        %351 = vmatprep.subr.bf16.mxu0 0
        %352 = vmatpush1.bf16.msra.mxu0 0
        %353 = vmatprep.subr.bf16.mxu0 0
        %354 = vmatpush1.bf16.msra.mxu0 0
        %355 = vmatprep.subr.bf16.mxu0 0
        %356 = vmatpush1.bf16.msra.mxu0 0
        %357 = vmatprep.subr.bf16.mxu0 0
        %358 = vmatpush1.bf16.msra.mxu0 0
        %359 = vmatprep.subr.bf16.mxu0 0
        %360 = vmatpush1.bf16.msra.mxu0 0
        %361 = vmatprep.subr.bf16.mxu0 0
        %362 = vmatpush1.bf16.msra.mxu0 0
        %363 = vmatprep.subr.bf16.mxu0 0
        %364 = vmatpush1.bf16.msra.mxu0 0
        %365 = vmatprep.mubr.bf16.mxu0 0
        %366 = vmatmul.mubr.bf16.gmra.mrb[0].mxu0 %v268
        %v367 = vpop.f32.mrb[0].mxu0
        %v368 = vadd.f32 %v267, %v367
        %v369 = vpop.f32.mrb[0].mxu0
        %v370 = vpop.f32.mrb[0].mxu0
        %v371 = vpop.f32.mrb[0].mxu0
        %372 = vdwg.mxu0
        %v373 = vld [vmem:[#allocation4] sm:$0xff]
        %v374 = vld [vmem:[#allocation4 + $0x8] sm:$0xff]
        %v375 = vld [vmem:[#allocation4 + $0x10] sm:$0xff]
        %v376 = vld [vmem:[#allocation4 + $0x18] sm:$0xff]
        %v377 = vld [vmem:[#allocation4 + $0x20] sm:$0xff]
        %v378 = vld [vmem:[#allocation4 + $0x28] sm:$0xff]
        %v379 = vld [vmem:[#allocation4 + $0x30] sm:$0xff]
        %v380 = vld [vmem:[#allocation4 + $0x38] sm:$0xff]
        %v381 = vld [vmem:[#allocation4 + $0x40] sm:$0xff]
        %v382 = vld [vmem:[#allocation4 + $0x48] sm:$0xff]
        %v383 = vld [vmem:[#allocation4 + $0x50] sm:$0xff]
        %v384 = vld [vmem:[#allocation4 + $0x58] sm:$0xff]
        %v385 = vld [vmem:[#allocation4 + $0x60] sm:$0xff]
        %v386 = vld [vmem:[#allocation4 + $0x68] sm:$0xff]
        %v387 = vld [vmem:[#allocation4 + $0x70] sm:$0xff]
        %v388 = vld [vmem:[#allocation4 + $0x78] sm:$0xff]
        %389 = vmatprep.subr.mxu0 0.0
        %390 = vmatpush1.msra.mxu0 %v373
        %391 = vmatprep.subr.mxu0 0.0
        %392 = vmatpush1.msra.mxu0 %v374
        %393 = vmatprep.subr.mxu0 0.0
        %394 = vmatpush1.msra.mxu0 %v375
        %395 = vmatprep.subr.mxu0 0.0
        %396 = vmatpush1.msra.mxu0 %v376
        %397 = vmatprep.subr.mxu0 0.0
        %398 = vmatpush1.msra.mxu0 %v377
        %399 = vmatprep.subr.mxu0 0.0
        %400 = vmatpush1.msra.mxu0 %v378
        %401 = vmatprep.subr.mxu0 0.0
        %402 = vmatpush1.msra.mxu0 %v379
        %403 = vmatprep.subr.mxu0 0.0
        %404 = vmatpush1.msra.mxu0 %v380
        %405 = vmatprep.subr.mxu0 0.0
        %406 = vmatpush1.msra.mxu0 %v381
        %407 = vmatprep.subr.mxu0 0.0
        %408 = vmatpush1.msra.mxu0 %v382
        %409 = vmatprep.subr.mxu0 0.0
        %410 = vmatpush1.msra.mxu0 %v383
        %411 = vmatprep.subr.mxu0 0.0
        %412 = vmatpush1.msra.mxu0 %v384
        %413 = vmatprep.subr.mxu0 0.0
        %414 = vmatpush1.msra.mxu0 %v385
        %415 = vmatprep.subr.mxu0 0.0
        %416 = vmatpush1.msra.mxu0 %v386
        %417 = vmatprep.subr.mxu0 0.0
        %418 = vmatpush1.msra.mxu0 %v387
        %419 = vmatprep.subr.mxu0 0.0
        %420 = vmatpush1.msra.mxu0 %v388
        %421 = vmatprep.subr.mxu0 0.0
        %422 = vmatpush1.msra.mxu0 0.0
        %423 = vmatprep.subr.mxu0 0.0
        %424 = vmatpush1.msra.mxu0 0.0
        %425 = vmatprep.subr.mxu0 0.0
        %426 = vmatpush1.msra.mxu0 0.0
        %427 = vmatprep.subr.mxu0 0.0
        %428 = vmatpush1.msra.mxu0 0.0
        %429 = vmatprep.subr.mxu0 0.0
        %430 = vmatpush1.msra.mxu0 0.0
        %431 = vmatprep.subr.mxu0 0.0
        %432 = vmatpush1.msra.mxu0 0.0
        %433 = vmatprep.subr.mxu0 0.0
        %434 = vmatpush1.msra.mxu0 0.0
        %435 = vmatprep.subr.mxu0 0.0
        %436 = vmatpush1.msra.mxu0 0.0
        %437 = vmatprep.subr.mxu0 0.0
        %438 = vmatpush1.msra.mxu0 0.0
        %439 = vmatprep.subr.mxu0 0.0
        %440 = vmatpush1.msra.mxu0 0.0
        %441 = vmatprep.subr.mxu0 0.0
        %442 = vmatpush1.msra.mxu0 0.0
        %443 = vmatprep.subr.mxu0 0.0
        %444 = vmatpush1.msra.mxu0 0.0
        %445 = vmatprep.subr.mxu0 0.0
        %446 = vmatpush1.msra.mxu0 0.0
        %447 = vmatprep.subr.mxu0 0.0
        %448 = vmatpush1.msra.mxu0 0.0
        %449 = vmatprep.subr.mxu0 0.0
        %450 = vmatpush1.msra.mxu0 0.0
        %451 = vmatprep.subr.mxu0 0.0
        %452 = vmatpush1.msra.mxu0 0.0
        %453 = vmatprep.mubr.f32.mxu0 0.0
        %454 = vmatmul.mubr.f32.gmra.mrb[0].mxu0 %v368
        %v455 = vpop.f32.mrb[0].mxu0
        %v456 = vadd.f32 0.0, %v455
        %v457 = vpop.f32.mrb[0].mxu0
        %458 = vdwg.mxu0
        %v459 = vmul.f32 %v368, %v368
        %460 = vmatprep.subr.mxu0 0.0
        %461 = vmatpush1.msra.mxu0 %v373
        %462 = vmatprep.subr.mxu0 0.0
        %463 = vmatpush1.msra.mxu0 %v374
        %464 = vmatprep.subr.mxu0 0.0
        %465 = vmatpush1.msra.mxu0 %v375
        %466 = vmatprep.subr.mxu0 0.0
        %467 = vmatpush1.msra.mxu0 %v376
        %468 = vmatprep.subr.mxu0 0.0
        %469 = vmatpush1.msra.mxu0 %v377
        %470 = vmatprep.subr.mxu0 0.0
        %471 = vmatpush1.msra.mxu0 %v378
        %472 = vmatprep.subr.mxu0 0.0
        %473 = vmatpush1.msra.mxu0 %v379
        %474 = vmatprep.subr.mxu0 0.0
        %475 = vmatpush1.msra.mxu0 %v380
        %476 = vmatprep.subr.mxu0 0.0
        %477 = vmatpush1.msra.mxu0 %v381
        %478 = vmatprep.subr.mxu0 0.0
        %479 = vmatpush1.msra.mxu0 %v382
        %480 = vmatprep.subr.mxu0 0.0
        %481 = vmatpush1.msra.mxu0 %v383
        %482 = vmatprep.subr.mxu0 0.0
        %483 = vmatpush1.msra.mxu0 %v384
        %484 = vmatprep.subr.mxu0 0.0
        %485 = vmatpush1.msra.mxu0 %v385
        %486 = vmatprep.subr.mxu0 0.0
        %487 = vmatpush1.msra.mxu0 %v386
        %488 = vmatprep.subr.mxu0 0.0
        %489 = vmatpush1.msra.mxu0 %v387
        %490 = vmatprep.subr.mxu0 0.0
        %491 = vmatpush1.msra.mxu0 %v388
        %492 = vmatprep.subr.mxu0 0.0
        %493 = vmatpush1.msra.mxu0 0.0
        %494 = vmatprep.subr.mxu0 0.0
        %495 = vmatpush1.msra.mxu0 0.0
        %496 = vmatprep.subr.mxu0 0.0
        %497 = vmatpush1.msra.mxu0 0.0
        %498 = vmatprep.subr.mxu0 0.0
        %499 = vmatpush1.msra.mxu0 0.0
        %500 = vmatprep.subr.mxu0 0.0
        %501 = vmatpush1.msra.mxu0 0.0
        %502 = vmatprep.subr.mxu0 0.0
        %503 = vmatpush1.msra.mxu0 0.0
        %504 = vmatprep.subr.mxu0 0.0
        %505 = vmatpush1.msra.mxu0 0.0
        %506 = vmatprep.subr.mxu0 0.0
        %507 = vmatpush1.msra.mxu0 0.0
        %508 = vmatprep.subr.mxu0 0.0
        %509 = vmatpush1.msra.mxu0 0.0
        %510 = vmatprep.subr.mxu0 0.0
        %511 = vmatpush1.msra.mxu0 0.0
        %512 = vmatprep.subr.mxu0 0.0
        %513 = vmatpush1.msra.mxu0 0.0
        %514 = vmatprep.subr.mxu0 0.0
        %515 = vmatpush1.msra.mxu0 0.0
        %516 = vmatprep.subr.mxu0 0.0
        %517 = vmatpush1.msra.mxu0 0.0
        %518 = vmatprep.subr.mxu0 0.0
        %519 = vmatpush1.msra.mxu0 0.0
        %520 = vmatprep.subr.mxu0 0.0
        %521 = vmatpush1.msra.mxu0 0.0
        %522 = vmatprep.subr.mxu0 0.0
        %523 = vmatpush1.msra.mxu0 0.0
        %524 = vmatprep.mubr.f32.mxu0 0.0
        %525 = vmatmul.mubr.f32.gmra.mrb[0].mxu0 %v459
        %v526 = vpop.f32.mrb[0].mxu0
        %v527 = vadd.f32 0.0, %v526
        %v528 = vpop.f32.mrb[0].mxu0
        %529 = vdwg.mxu0
        %v530 = vmul.f32 %v456, %v456
        %v531 = vsub.f32 %v527, %v530
        %v532 = vmax.f32 %v531, 0.0
        %v533 = vadd.f32 %v532, 1e-05
        %v534 = vrsqrt.pop %v533
        %v535 = vld [vmem:[%s260] sm:$0x1]
        %v536 = vld [vmem:[%s260 + $0x1] sm:$0x1]
        %v537 = vsub.f32 %v368, %v456
        %v538 = vmul.f32 %v537, %v534
        %v539 = vlaneseq
        %v540 = vshrl.u32 %v539, 7
        %v541 = vsub.s32 0, %v540
        %v542 = vrot.slane %v535, %v541
        %v543 = vmul.f32 %v538, %v542
        %v544 = vlaneseq
        %v545 = vshrl.u32 %v544, 7
        %v546 = vsub.s32 0, %v545
        %v547 = vrot.slane %v536, %v546
        %v548 = vadd.f32 %v543, %v547
        %549 = vst [vmem:[%s265] sm:$0xff] %v548
        %p550 = scmp.lt.s32.totalorder %s23, 1
        %s551 = scalar_select %p550, %s23, 1
        %s552 = smul.addr %s551, 8
        %s553 = scalar_lea.vmem %s5, %s552
        // Predicated region
        $region41: #{_fused_impl.1} parent=35 // pred_check
          %p554 = pneg %p144
        $region42: #{_fused_impl.1} parent=35 // pred_check_branch
          %556 = sbr.rel (%p554) target = $region44
        $region43: #{_fused_impl.1} parent=35 // pred_region
          _
        $region44: #{_fused_impl.1} parent=35 // pred_fallthru
          _
      $region36: #{_fused_impl.1} parent=5 // pred_fallthru
        _
      %p557 = scmp.le.s32.totalorder 2, %s18
      // Predicated region
      $region45: #{_fused_impl.1} parent=5 // pred_check
        %p558 = pneg %p557
      $region46: #{_fused_impl.1} parent=5 // pred_check_branch
        %560 = sbr.rel (%p558) target = $region48
      $region47: #{_fused_impl.1} parent=5 // pred_region
        %s561 = ssub.s32 %s18, 2
        // Predicated region
        $region49: #{_fused_impl.1} parent=47 // pred_check
          %p562 = pneg %p150
        $region50: #{_fused_impl.1} parent=47 // pred_check_branch
          %564 = sbr.rel (%p562) target = $region52
        $region51: #{_fused_impl.1} parent=47 // pred_region
          %p565 = scmp.lt.s32.totalorder %s24, 1
          %s566 = scalar_select %p565, %s24, 1
          %s567 = smul.addr %s566, 8
          %s568 = scalar_lea.vmem %s5, %s567
        $region52: #{_fused_impl.1} parent=47 // pred_fallthru
          _
      $region48: #{_fused_impl.1} parent=5 // pred_fallthru
        _
    $region6: #{_fused_impl.1} parent=1 // loop_footer
      %s22 = sadd.s32 1, %s18
    $region7: #{_fused_impl.1} parent=1 // loop_footer_branch
      %17 = sbr.rel target = $region3
    $region8: #{_fused_impl.1} parent=1 // loop_exit
      _
    %569 = vsyncpa [#allocation5], 1
    %s570 = scalar_lea.sflag [#allocation5], 1
    %571 = vsyncpa %s570, 1

</llo_original>
